<compile_context>
chip_gen: v5e
topology: v5e:2x2
jax: 0.10.0
libtpu: 0.0.40
codegen_flags: <defaults>
</compile_context>

<pallas_src>
import jax
import jax.numpy as jnp
from jax.experimental import pallas as pl
from jax.experimental.pallas import tpu as pltpu

H = 5                 # hidden width from the PyTorch module
N_CLASSES = 10
IN_FEATS = 28 * 28

# Lane-dense padded widths used inside the kernel.
H_PAD = 128
OUT_PAD = 128
OUT_STORE = 16        # stored output width (>= N_CLASSES, == full array dim)
NEG_INF = -1e30

# Batch tiling: sized for DMA efficiency (mem-bound), not MXU rows.
TB_MAX = 1024         # max rows per grid step
TB_SPLIT = 512        # batches >= this get >= 2 (even) tiles for v7x's 2 TCs


def fcn_kernel(x_ref, w1_ref, w2_ref, mask_ref, o_ref):
    # x_ref:    (TB, 784)        f32   batch tile (pipelined per grid step)
    # w1_ref:   (784, H_PAD)     bf16  cols >= H are zero          (resident)
    # w2_ref:   (H_PAD, OUT_PAD) bf16  rows >= H / cols >= 10 zero (resident)
    # mask_ref: (1, OUT_PAD)     f32   0 for real classes, -1e30 for padding
    # o_ref:    (TB, OUT_STORE)  f32   log-softmax; first N_CLASSES cols valid

    # bf16 cast in-kernel (VPU, hidden under the x DMA) instead of a separate
    # XLA cast pass over x in HBM.
    x = x_ref[...].astype(jnp.bfloat16)

    # fc1 + ReLU: bf16 MXU matmul, f32 accumulate; ReLU in f32 on the VPU.
    h1 = jnp.dot(x, w1_ref[...], preferred_element_type=jnp.float32)
    h1 = jnp.maximum(h1, 0.0)

    # fc2: back to bf16 only for the MXU, accumulate in f32.
    logits = jnp.dot(h1.astype(jnp.bfloat16), w2_ref[...],
                     preferred_element_type=jnp.float32)

    # Precomputed additive class-padding mask (no per-tile iota/where).
    logits = logits + mask_ref[...]

    # log_softmax along dim=1, numerically stable, all epilogue math in f32.
    m = jnp.max(logits, axis=1, keepdims=True)
    shifted = logits - m
    lse = jnp.log(jnp.sum(jnp.exp(shifted), axis=1, keepdims=True))

    # Store only the first OUT_STORE lanes (masked vst; the vst slot is far
    # from saturation in this DMA-bound kernel).
    o_ref[...] = shifted[:, :OUT_STORE] - lse


def prepare_params(w1, w2):
    """One-time weight prep (transpose + zero-pad + bf16). NOT per-call.

    w1: (H, 784) fc1.weight, w2: (10, H) fc2.weight  (PyTorch layouts).
    """
    w1_t = jnp.zeros((IN_FEATS, H_PAD), jnp.bfloat16).at[:, :H].set(
        w1.T.astype(jnp.bfloat16))
    w2_t = jnp.zeros((H_PAD, OUT_PAD), jnp.bfloat16).at[:H, :N_CLASSES].set(
        w2.T.astype(jnp.bfloat16))
    mask = jnp.where(jnp.arange(OUT_PAD) < N_CLASSES, 0.0, NEG_INF)
    mask = mask.astype(jnp.float32).reshape(1, OUT_PAD)
    return w1_t, w2_t, mask


def _round_up(n, m):
    return ((n + m - 1) // m) * m


def _choose_grid(b8):
    """Pick (batch_tile, n_tiles) for a batch already rounded up to 8 rows."""
    if b8 < TB_SPLIT:
        return b8, 1                      # single small tile
    n = max(2, pl.cdiv(b8, TB_MAX))
    if n % 2:
        n += 1                            # even tile count balances v7x's 2 TCs
    tb = _round_up(pl.cdiv(b8, n), 8)
    return tb, pl.cdiv(b8, tb)            # last block may be partial (cdiv grid)


@jax.jit
def net_forward(x, w1_t, w2_t, mask):
    """x: (B, 1, 28, 28) or (B, 784) f32. w1_t/w2_t/mask from prepare_params."""
    x = x.reshape(-1, IN_FEATS)
    B = x.shape[0]

    # Pad only to a sublane multiple (<= 7 rows). Tile alignment is handled by
    # the cdiv grid + partial boundary blocks, so no full tile-sized pad copy.
    b8 = _round_up(B, 8)
    if b8 != B:
        x = jnp.pad(x, ((0, b8 - B), (0, 0)))
    tb, n_tiles = _choose_grid(b8)

    cost = pl.CostEstimate(
        flops=2 * b8 * IN_FEATS * H_PAD + 2 * b8 * H_PAD * OUT_PAD,
        transcendentals=b8 * (OUT_PAD + 1),
        bytes_accessed=(x.size * 4                        # f32 activations
                        + w1_t.size * 2 + w2_t.size * 2   # bf16 weights
                        + mask.size * 4
                        + b8 * OUT_STORE * 4),            # narrow f32 output
    )

    out_p = pl.pallas_call(
        fcn_kernel,
        out_shape=jax.ShapeDtypeStruct((b8, OUT_STORE), jnp.float32),
        grid_spec=pltpu.PrefetchScalarGridSpec(
            num_scalar_prefetch=0,
            grid=(n_tiles,),
            in_specs=[
                # Streaming f32 activations: the only big per-step DMA.
                pl.BlockSpec((tb, IN_FEATS), lambda i: (i, 0)),
                # Resident bf16 weights / f32 mask (constant index_map, fetched
                # once; at ~0.5 MB their default double-buffering is harmless
                # even within v7x's tighter scoped-VMEM budget).
                pl.BlockSpec((IN_FEATS, H_PAD), lambda i: (0, 0)),
                pl.BlockSpec((H_PAD, OUT_PAD), lambda i: (0, 0)),
                pl.BlockSpec((1, OUT_PAD), lambda i: (0, 0)),
            ],
            out_specs=pl.BlockSpec((tb, OUT_STORE), lambda i: (i, 0)),
        ),
        compiler_params=pltpu.CompilerParams(
            dimension_semantics=("parallel",)),   # batch tiles shard across TCs
        cost_estimate=cost,
    )(x, w1_t, w2_t, mask)

    return out_p[:B, :N_CLASSES]


def init_params(key):
    # nn.Linear(bias=False) default init: U(-1/sqrt(fan_in), 1/sqrt(fan_in));
    # alpha = 1.0 in the reference module.
    k1, k2 = jax.random.split(key)
    b1 = 1.0 / jnp.sqrt(jnp.float32(IN_FEATS))
    b2 = 1.0 / jnp.sqrt(jnp.float32(H))
    w1 = jax.random.uniform(k1, (H, IN_FEATS), jnp.float32, -b1, b1)   # fc1.weight
    w2 = jax.random.uniform(k2, (N_CLASSES, H), jnp.float32, -b2, b2)  # fc2.weight
    return w1, w2


if __name__ == "__main__":
    key = jax.random.PRNGKey(0)
    kx, kp = jax.random.split(key)
    w1, w2 = init_params(kp)

    # Weight prep happens exactly once, outside the forward call path.
    w1_t, w2_t, mask = prepare_params(w1, w2)
    w1_t, w2_t, mask = jax.block_until_ready((w1_t, w2_t, mask))

    # Small MNIST-like batch: (B, 1, 28, 28), NCHW like the PyTorch input.
    x = jax.random.normal(kx, (2, 1, 28, 28), jnp.float32)

    out = net_forward(x, w1_t, w2_t, mask)
    out = jax.block_until_ready(out)

    # Sanity: log_softmax rows should sum (in prob space) to 1.
    row_sums = jnp.sum(jnp.exp(out), axis=1)
    assert out.shape == (2, N_CLASSES)
    assert bool(jnp.all(jnp.abs(row_sums - 1.0) < 1e-3))
    print("KERNEL_OK")
</pallas_src>

<mosaic_0001>
module attributes {stable_mosaic.version = 11 : i64} {
  func.func @fcn_kernel(%arg0: i32, %arg1: memref<8x784xf32, #tpu.memory_space<vmem>>, %arg2: memref<784x128xbf16, #tpu.memory_space<vmem>>, %arg3: memref<128x128xbf16, #tpu.memory_space<vmem>>, %arg4: memref<1x128xf32, #tpu.memory_space<vmem>>, %arg5: memref<8x16xf32, #tpu.memory_space<vmem>>) attributes {dimension_semantics = [#tpu.dimension_semantics<parallel>], iteration_bounds = array<i64: 1>, scalar_prefetch = 0 : i64, scratch_operands = 0 : i64, tpu.core_type = #tpu.core_type<tc>, window_params = [{transform_indices = @transform_0, window_bounds = array<i64: 8, 784>}, {pipeline_mode = #tpu.pipeline_mode<synchronous>, transform_indices = @transform_1, window_bounds = array<i64: 784, 128>}, {pipeline_mode = #tpu.pipeline_mode<synchronous>, transform_indices = @transform_2, window_bounds = array<i64: 128, 128>}, {pipeline_mode = #tpu.pipeline_mode<synchronous>, transform_indices = @transform_3, window_bounds = array<i64: 1, 128>}, {transform_indices = @transform_4, window_bounds = array<i64: 8, 16>}]} {
    %c0 = arith.constant 0 : index
    %c0_0 = arith.constant 0 : index
    %0 = vector.load %arg1[%c0, %c0_0] : memref<8x784xf32, #tpu.memory_space<vmem>>, vector<8x784xf32>
    %1 = arith.truncf %0 : vector<8x784xf32> to vector<8x784xbf16>
    %c0_1 = arith.constant 0 : index
    %c0_2 = arith.constant 0 : index
    %2 = vector.load %arg2[%c0_1, %c0_2] : memref<784x128xbf16, #tpu.memory_space<vmem>>, vector<784x128xbf16>
    %cst = arith.constant dense<0.000000e+00> : vector<8x128xf32>
    %3 = tpu.matmul %1, %2, %cst {dimension_numbers = #tpu.dot_dimension_numbers<[1], [0], [0], [1], [0, 0, 1, 1], [], []>} : vector<8x784xbf16>, vector<784x128xbf16>, vector<8x128xf32> -> vector<8x128xf32>
    %cst_3 = arith.constant 0.000000e+00 : f32
    %4 = vector.broadcast %cst_3 : f32 to vector<8x128xf32>
    %5 = arith.maximumf %3, %4 : vector<8x128xf32>
    %6 = arith.truncf %5 : vector<8x128xf32> to vector<8x128xbf16>
    %c0_4 = arith.constant 0 : index
    %c0_5 = arith.constant 0 : index
    %7 = vector.load %arg3[%c0_4, %c0_5] : memref<128x128xbf16, #tpu.memory_space<vmem>>, vector<128x128xbf16>
    %cst_6 = arith.constant dense<0.000000e+00> : vector<8x128xf32>
    %8 = tpu.matmul %6, %7, %cst_6 {dimension_numbers = #tpu.dot_dimension_numbers<[1], [0], [0], [1], [0, 0, 1, 1], [], []>} : vector<8x128xbf16>, vector<128x128xbf16>, vector<8x128xf32> -> vector<8x128xf32>
    %c0_7 = arith.constant 0 : index
    %c0_8 = arith.constant 0 : index
    %9 = vector.load %arg4[%c0_7, %c0_8] : memref<1x128xf32, #tpu.memory_space<vmem>>, vector<1x128xf32>
    %10 = vector.broadcast %9 : vector<1x128xf32> to vector<8x128xf32>
    %11 = arith.addf %8, %10 : vector<8x128xf32>
    %cst_9 = arith.constant dense<0xFF800000> : vector<8xf32>
    %12 = vector.multi_reduction <maximumf>, %11, %cst_9 [1] : vector<8x128xf32> to vector<8xf32>
    %13 = vector.shape_cast %12 : vector<8xf32> to vector<8x1xf32>
    %14 = vector.broadcast %13 : vector<8x1xf32> to vector<8x128xf32>
    %15 = arith.subf %11, %14 : vector<8x128xf32>
    %16 = math.exp %15 : vector<8x128xf32>
    %cst_10 = arith.constant dense<0.000000e+00> : vector<8xf32>
    %17 = vector.multi_reduction <add>, %16, %cst_10 [1] : vector<8x128xf32> to vector<8xf32>
    %18 = vector.shape_cast %17 : vector<8xf32> to vector<8x1xf32>
    %19 = math.log %18 : vector<8x1xf32>
    %20 = vector.extract_strided_slice %15 {offsets = [0, 0], sizes = [8, 16], strides = [1, 1]} : vector<8x128xf32> to vector<8x16xf32>
    %21 = vector.broadcast %19 : vector<8x1xf32> to vector<8x16xf32>
    %22 = arith.subf %20, %21 : vector<8x16xf32>
    %c0_11 = arith.constant 0 : index
    %c0_12 = arith.constant 0 : index
    %23 = vector.load %arg5[%c0_11, %c0_12] : memref<8x16xf32, #tpu.memory_space<vmem>>, vector<8x16xf32>
    tpu.vector_store %arg5[%c0_11, %c0_12], %22 {strides = array<i32>} : memref<8x16xf32, #tpu.memory_space<vmem>>, vector<8x16xf32>,
    return
  }
  func.func @transform_0(%arg0: i32) -> (i32, i32) {
    %c0_i32 = arith.constant 0 : i32
    %c0_i32_0 = arith.constant 0 : i32
    return %arg0, %c0_i32 : i32, i32
  }
  func.func @transform_1(%arg0: i32) -> (i32, i32) {
    %c0_i32 = arith.constant 0 : i32
    %c0_i32_0 = arith.constant 0 : i32
    %c0_i32_1 = arith.constant 0 : i32
    return %c0_i32, %c0_i32_0 : i32, i32
  }
  func.func @transform_2(%arg0: i32) -> (i32, i32) {
    %c0_i32 = arith.constant 0 : i32
    %c0_i32_0 = arith.constant 0 : i32
    %c0_i32_1 = arith.constant 0 : i32
    return %c0_i32, %c0_i32_0 : i32, i32
  }
  func.func @transform_3(%arg0: i32) -> (i32, i32) {
    %c0_i32 = arith.constant 0 : i32
    %c0_i32_0 = arith.constant 0 : i32
    %c0_i32_1 = arith.constant 0 : i32
    return %c0_i32, %c0_i32_0 : i32, i32
  }
  func.func @transform_4(%arg0: i32) -> (i32, i32) {
    %c0_i32 = arith.constant 0 : i32
    %c0_i32_0 = arith.constant 0 : i32
    return %arg0, %c0_i32 : i32, i32
  }
}

</mosaic_0001>

<llo_original>
// kernel: net_forward.1
$region0: #{net_forward.1}
  #allocation0 [shape = 'u32[]', space=smem, size = 0x4, offset = 0x4, fixed_abs, tag = 'smem constant byte address 0x4 - core index']
  #allocation1 [shape = 'u32[72,128]{1,0:T(1,128)}', space=vmem, size = 0x9000, scoped, tag = 'internal scratch']
  %s0 = inlined_call_operand.vmem [shape: f32[8,784], index: 0, kind: input, shape index: {}]
  %s1 = inlined_call_operand.hbm [shape: bf16[784,128], index: 1, kind: input, shape index: {}]
  %s2 = inlined_call_operand.vmem [shape: bf16[128,128], index: 2, kind: input, shape index: {}]
  %s3 = inlined_call_operand.vmem [shape: f32[1,128], index: 3, kind: input, shape index: {}]
  %s4 = inlined_call_operand.vmem [shape: f32[8,16], index: 4, kind: output, shape index: {}]
  %s5 = sld [smem:[#allocation0]]
  $region30: #{net_forward.1} parent=0
    _
  %s7 = ssub.s32 1, %s5
  %s8 = scalar_select 0, %s7, %s5
  $region1: #{net_forward.1} parent=0
    #allocation2 [shape = 'u8[200704]{0}', space=vmem, size = 0x31000, scoped, tag = 'input window, operand 1, single buffered']
    #allocation3 [shape = 's32[1]{0}', space=sflag, size = 0x4, scoped, tag = 'scoped memory for net_forward.1']
    %9 = vsyncpa [#allocation3], 0
    // Predicated region
    $region2: #{net_forward.1} parent=1 // pred_check
      _
    $region3: #{net_forward.1} parent=1 // pred_check_branch
      %11 = sbr.rel (0) target = $region5
    $region4: #{net_forward.1} parent=1 // pred_region
      _
    $region5: #{net_forward.1} parent=1 // pred_fallthru
      _
    // Predicated region
    $region6: #{net_forward.1} parent=1 // pred_check
      _
    $region7: #{net_forward.1} parent=1 // pred_check_branch
      %13 = sbr.rel (0) target = $region9
    $region8: #{net_forward.1} parent=1 // pred_region
      %15 = vsyncadd [#allocation3], 0
      %s16 = sshll.u32 %s1, 4
      %s17 = int_to_ptr.hbm [resolvable:$true] %s16
      %s18 = sshll.u32 [#allocation2], 4
      %s19 = int_to_ptr.vmem [resolvable:$true] %s18
      %24 = dma.hbm_to_vmem [thread:$0]  %s17, 6272, %s19, [#allocation3], 64, 64, 4
    $region9: #{net_forward.1} parent=1 // pred_fallthru
      _
    // Predicated region
    $region10: #{net_forward.1} parent=1 // pred_check
      _
    $region11: #{net_forward.1} parent=1 // pred_check_branch
      %26 = sbr.rel (0) target = $region13
    $region12: #{net_forward.1} parent=1 // pred_region
      _
    $region13: #{net_forward.1} parent=1 // pred_fallthru
      _
    // Predicated region
    $region14: #{net_forward.1} parent=1 // pred_check
      _
    $region15: #{net_forward.1} parent=1 // pred_check_branch
      %28 = sbr.rel (0) target = $region17
    $region16: #{net_forward.1} parent=1 // pred_region
      _
    $region17: #{net_forward.1} parent=1 // pred_fallthru
      _
    // Predicated region
    $region18: #{net_forward.1} parent=1 // pred_check
      _
    $region19: #{net_forward.1} parent=1 // pred_check_branch
      %30 = sbr.rel (0) target = $region21
    $region20: #{net_forward.1} parent=1 // pred_region
      %32 = dma.done [#allocation3], 6272
    $region21: #{net_forward.1} parent=1 // pred_fallthru
      _
    %v34 = vld [vmem:[%s0] sm:$0xff]
    %v35 = vld [vmem:[%s0 + $0x8] sm:$0xff]
    %v36 = vld [vmem:[%s0 + $0x10] sm:$0xff]
    %v37 = vld [vmem:[%s0 + $0x18] sm:$0xff]
    %v38 = vld [vmem:[%s0 + $0x20] sm:$0xff]
    %v39 = vld [vmem:[%s0 + $0x28] sm:$0xff]
    %v40 = vld [vmem:[%s0 + $0x30] sm:$0xff]
    %v41 = vpack.c.bf16 %v34, %v34
    %v42 = vpack.c.bf16 %v35, %v35
    %v43 = vpack.c.bf16 %v36, %v36
    %v44 = vpack.c.bf16 %v37, %v37
    %v45 = vpack.c.bf16 %v38, %v38
    %v46 = vpack.c.bf16 %v39, %v39
    %v47 = vpack.c.bf16 %v40, %v40
    %v48 = vld [vmem:[#allocation2] sm:$0xf]
    %v49 = vld [vmem:[#allocation2 + $0x4] sm:$0xf]
    %v50 = vld [vmem:[#allocation2 + $0x8] sm:$0xf]
    %v51 = vld [vmem:[#allocation2 + $0xc] sm:$0xf]
    %v52 = vld [vmem:[#allocation2 + $0x10] sm:$0xf]
    %v53 = vld [vmem:[#allocation2 + $0x14] sm:$0xf]
    %v54 = vld [vmem:[#allocation2 + $0x18] sm:$0xf]
    %v55 = vld [vmem:[#allocation2 + $0x1c] sm:$0xf]
    %v56 = vld [vmem:[#allocation2 + $0x20] sm:$0xf]
    %v57 = vld [vmem:[#allocation2 + $0x24] sm:$0xf]
    %v58 = vld [vmem:[#allocation2 + $0x28] sm:$0xf]
    %v59 = vld [vmem:[#allocation2 + $0x2c] sm:$0xf]
    %v60 = vld [vmem:[#allocation2 + $0x30] sm:$0xf]
    %v61 = vld [vmem:[#allocation2 + $0x34] sm:$0xf]
    %v62 = vld [vmem:[#allocation2 + $0x38] sm:$0xf]
    %v63 = vld [vmem:[#allocation2 + $0x3c] sm:$0xf]
    %v64 = vld [vmem:[#allocation2 + $0x40] sm:$0xf]
    %v65 = vld [vmem:[#allocation2 + $0x44] sm:$0xf]
    %v66 = vld [vmem:[#allocation2 + $0x48] sm:$0xf]
    %v67 = vld [vmem:[#allocation2 + $0x4c] sm:$0xf]
    %v68 = vld [vmem:[#allocation2 + $0x50] sm:$0xf]
    %v69 = vld [vmem:[#allocation2 + $0x54] sm:$0xf]
    %v70 = vld [vmem:[#allocation2 + $0x58] sm:$0xf]
    %v71 = vld [vmem:[#allocation2 + $0x5c] sm:$0xf]
    %v72 = vld [vmem:[#allocation2 + $0x60] sm:$0xf]
    %v73 = vld [vmem:[#allocation2 + $0x64] sm:$0xf]
    %v74 = vld [vmem:[#allocation2 + $0x68] sm:$0xf]
    %v75 = vld [vmem:[#allocation2 + $0x6c] sm:$0xf]
    %v76 = vld [vmem:[#allocation2 + $0x70] sm:$0xf]
    %v77 = vld [vmem:[#allocation2 + $0x74] sm:$0xf]
    %v78 = vld [vmem:[#allocation2 + $0x78] sm:$0xf]
    %v79 = vld [vmem:[#allocation2 + $0x7c] sm:$0xf]
    %v80 = vld [vmem:[#allocation2 + $0x80] sm:$0xf]
    %v81 = vld [vmem:[#allocation2 + $0x84] sm:$0xf]
    %v82 = vld [vmem:[#allocation2 + $0x88] sm:$0xf]
    %v83 = vld [vmem:[#allocation2 + $0x8c] sm:$0xf]
    %v84 = vld [vmem:[#allocation2 + $0x90] sm:$0xf]
    %v85 = vld [vmem:[#allocation2 + $0x94] sm:$0xf]
    %v86 = vld [vmem:[#allocation2 + $0x98] sm:$0xf]
    %v87 = vld [vmem:[#allocation2 + $0x9c] sm:$0xf]
    %v88 = vld [vmem:[#allocation2 + $0xa0] sm:$0xf]
    %v89 = vld [vmem:[#allocation2 + $0xa4] sm:$0xf]
    %v90 = vld [vmem:[#allocation2 + $0xa8] sm:$0xf]
    %v91 = vld [vmem:[#allocation2 + $0xac] sm:$0xf]
    %v92 = vld [vmem:[#allocation2 + $0xb0] sm:$0xf]
    %v93 = vld [vmem:[#allocation2 + $0xb4] sm:$0xf]
    %v94 = vld [vmem:[#allocation2 + $0xb8] sm:$0xf]
    %v95 = vld [vmem:[#allocation2 + $0xbc] sm:$0xf]
    %v96 = vld [vmem:[#allocation2 + $0xc0] sm:$0xf]
    %v97 = vld [vmem:[#allocation2 + $0xc4] sm:$0xf]
    %v98 = vld [vmem:[#allocation2 + $0xc8] sm:$0xf]
    %v99 = vld [vmem:[#allocation2 + $0xcc] sm:$0xf]
    %v100 = vld [vmem:[#allocation2 + $0xd0] sm:$0xf]
    %v101 = vld [vmem:[#allocation2 + $0xd4] sm:$0xf]
    %v102 = vld [vmem:[#allocation2 + $0xd8] sm:$0xf]
    %v103 = vld [vmem:[#allocation2 + $0xdc] sm:$0xf]
    %v104 = vld [vmem:[#allocation2 + $0xe0] sm:$0xf]
    %v105 = vld [vmem:[#allocation2 + $0xe4] sm:$0xf]
    %v106 = vld [vmem:[#allocation2 + $0xe8] sm:$0xf]
    %v107 = vld [vmem:[#allocation2 + $0xec] sm:$0xf]
    %v108 = vld [vmem:[#allocation2 + $0xf0] sm:$0xf]
    %v109 = vld [vmem:[#allocation2 + $0xf4] sm:$0xf]
    %v110 = vld [vmem:[#allocation2 + $0xf8] sm:$0xf]
    %v111 = vld [vmem:[#allocation2 + $0xfc] sm:$0xf]
    %v112 = vld [vmem:[#allocation2 + $0x100] sm:$0xf]
    %v113 = vld [vmem:[#allocation2 + $0x104] sm:$0xf]
    %v114 = vld [vmem:[#allocation2 + $0x108] sm:$0xf]
    %v115 = vld [vmem:[#allocation2 + $0x10c] sm:$0xf]
    %v116 = vld [vmem:[#allocation2 + $0x110] sm:$0xf]
    %v117 = vld [vmem:[#allocation2 + $0x114] sm:$0xf]
    %v118 = vld [vmem:[#allocation2 + $0x118] sm:$0xf]
    %v119 = vld [vmem:[#allocation2 + $0x11c] sm:$0xf]
    %v120 = vld [vmem:[#allocation2 + $0x120] sm:$0xf]
    %v121 = vld [vmem:[#allocation2 + $0x124] sm:$0xf]
    %v122 = vld [vmem:[#allocation2 + $0x128] sm:$0xf]
    %v123 = vld [vmem:[#allocation2 + $0x12c] sm:$0xf]
    %v124 = vld [vmem:[#allocation2 + $0x130] sm:$0xf]
    %v125 = vld [vmem:[#allocation2 + $0x134] sm:$0xf]
    %v126 = vld [vmem:[#allocation2 + $0x138] sm:$0xf]
    %v127 = vld [vmem:[#allocation2 + $0x13c] sm:$0xf]
    %v128 = vld [vmem:[#allocation2 + $0x140] sm:$0xf]
    %v129 = vld [vmem:[#allocation2 + $0x144] sm:$0xf]
    %v130 = vld [vmem:[#allocation2 + $0x148] sm:$0xf]
    %v131 = vld [vmem:[#allocation2 + $0x14c] sm:$0xf]
    %v132 = vld [vmem:[#allocation2 + $0x150] sm:$0xf]
    %v133 = vld [vmem:[#allocation2 + $0x154] sm:$0xf]
    %v134 = vld [vmem:[#allocation2 + $0x158] sm:$0xf]
    %v135 = vld [vmem:[#allocation2 + $0x15c] sm:$0xf]
    %v136 = vld [vmem:[#allocation2 + $0x160] sm:$0xf]
    %v137 = vld [vmem:[#allocation2 + $0x164] sm:$0xf]
    %v138 = vld [vmem:[#allocation2 + $0x168] sm:$0xf]
    %v139 = vld [vmem:[#allocation2 + $0x16c] sm:$0xf]
    %v140 = vld [vmem:[#allocation2 + $0x170] sm:$0xf]
    %v141 = vld [vmem:[#allocation2 + $0x174] sm:$0xf]
    %v142 = vld [vmem:[#allocation2 + $0x178] sm:$0xf]
    %v143 = vld [vmem:[#allocation2 + $0x17c] sm:$0xf]
    %v144 = vld [vmem:[#allocation2 + $0x180] sm:$0xf]
    %v145 = vld [vmem:[#allocation2 + $0x184] sm:$0xf]
    %v244 = vunpack.c.l.b16 %v48
    %v245 = vunpack.c.l.b16 %v49
    %v246 = vunpack.c.l.b16 %v50
    %v247 = vunpack.c.l.b16 %v51
    %v248 = vunpack.c.l.b16 %v52
    %v249 = vunpack.c.l.b16 %v53
    %v250 = vunpack.c.l.b16 %v54
    %v251 = vunpack.c.l.b16 %v55
    %v252 = vunpack.c.l.b16 %v56
    %v253 = vunpack.c.l.b16 %v57
    %v254 = vunpack.c.l.b16 %v58
    %v255 = vunpack.c.l.b16 %v59
    %v256 = vunpack.c.l.b16 %v60
    %v257 = vunpack.c.l.b16 %v61
    %v258 = vunpack.c.l.b16 %v62
    %v259 = vunpack.c.l.b16 %v63
    %v260 = vunpack.c.l.b16 %v64
    %v261 = vunpack.c.l.b16 %v65
    %v262 = vunpack.c.l.b16 %v66
    %v263 = vunpack.c.l.b16 %v67
    %v264 = vunpack.c.l.b16 %v68
    %v265 = vunpack.c.l.b16 %v69
    %v266 = vunpack.c.l.b16 %v70
    %v267 = vunpack.c.l.b16 %v71
    %v268 = vunpack.c.l.b16 %v72
    %v269 = vunpack.c.l.b16 %v73
    %v270 = vunpack.c.l.b16 %v74
    %v271 = vunpack.c.l.b16 %v75
    %v272 = vunpack.c.l.b16 %v76
    %v273 = vunpack.c.l.b16 %v77
    %v274 = vunpack.c.l.b16 %v78
    %v275 = vunpack.c.l.b16 %v79
    %v276 = vunpack.c.l.b16 %v80
    %v277 = vunpack.c.l.b16 %v81
    %v278 = vunpack.c.l.b16 %v82
    %v279 = vunpack.c.l.b16 %v83
    %v280 = vunpack.c.l.b16 %v84
    %v281 = vunpack.c.l.b16 %v85
    %v282 = vunpack.c.l.b16 %v86
    %v283 = vunpack.c.l.b16 %v87
    %v284 = vunpack.c.l.b16 %v88
    %v285 = vunpack.c.l.b16 %v89
    %v286 = vunpack.c.l.b16 %v90
    %v287 = vunpack.c.l.b16 %v91
    %v288 = vunpack.c.l.b16 %v92
    %v289 = vunpack.c.l.b16 %v93
    %v290 = vunpack.c.l.b16 %v94
    %v291 = vunpack.c.l.b16 %v95
    %v292 = vunpack.c.l.b16 %v96
    %v293 = vunpack.c.l.b16 %v97
    %v294 = vunpack.c.l.b16 %v98
    %v295 = vunpack.c.l.b16 %v99
    %v296 = vunpack.c.l.b16 %v100
    %v297 = vunpack.c.l.b16 %v101
    %v298 = vunpack.c.l.b16 %v102
    %v299 = vunpack.c.l.b16 %v103
    %v300 = vunpack.c.l.b16 %v104
    %v301 = vunpack.c.l.b16 %v105
    %v302 = vunpack.c.l.b16 %v106
    %v303 = vunpack.c.l.b16 %v107
    %v304 = vunpack.c.l.b16 %v108
    %v305 = vunpack.c.l.b16 %v109
    %v306 = vunpack.c.l.b16 %v110
    %v307 = vunpack.c.l.b16 %v111
    %v308 = vunpack.c.l.b16 %v112
    %v309 = vunpack.c.l.b16 %v113
    %v310 = vunpack.c.l.b16 %v114
    %v311 = vunpack.c.l.b16 %v115
    %v312 = vunpack.c.l.b16 %v116
    %v313 = vunpack.c.l.b16 %v117
    %v314 = vunpack.c.l.b16 %v118
    %v315 = vunpack.c.l.b16 %v119
    %v316 = vunpack.c.l.b16 %v120
    %v317 = vunpack.c.l.b16 %v121
    %v318 = vunpack.c.l.b16 %v122
    %v319 = vunpack.c.l.b16 %v123
    %v320 = vunpack.c.l.b16 %v124
    %v321 = vunpack.c.l.b16 %v125
    %v322 = vunpack.c.l.b16 %v126
    %v323 = vunpack.c.l.b16 %v127
    %v324 = vunpack.c.l.b16 %v128
    %v325 = vunpack.c.l.b16 %v129
    %v326 = vunpack.c.l.b16 %v130
    %v327 = vunpack.c.l.b16 %v131
    %v328 = vunpack.c.l.b16 %v132
    %v329 = vunpack.c.l.b16 %v133
    %v330 = vunpack.c.l.b16 %v134
    %v331 = vunpack.c.l.b16 %v135
    %v332 = vunpack.c.l.b16 %v136
    %v333 = vunpack.c.l.b16 %v137
    %v334 = vunpack.c.l.b16 %v138
    %v335 = vunpack.c.l.b16 %v139
    %v336 = vunpack.c.l.b16 %v140
    %v337 = vunpack.c.l.b16 %v141
    %v338 = vunpack.c.l.b16 %v142
    %v339 = vunpack.c.l.b16 %v143
    %v340 = vunpack.c.l.b16 %v144
    %v341 = vunpack.c.l.b16 %v145
    %v342 = vpack.c.b16 %v245, %v244
    %v343 = vpack.c.b16 %v247, %v246
    %v344 = vpack.c.b16 %v249, %v248
    %v345 = vpack.c.b16 %v251, %v250
    %v346 = vpack.c.b16 %v253, %v252
    %v347 = vpack.c.b16 %v255, %v254
    %v348 = vpack.c.b16 %v257, %v256
    %v349 = vpack.c.b16 %v259, %v258
    %v350 = vpack.c.b16 %v261, %v260
    %v351 = vpack.c.b16 %v263, %v262
    %v352 = vpack.c.b16 %v265, %v264
    %v353 = vpack.c.b16 %v267, %v266
    %v354 = vpack.c.b16 %v269, %v268
    %v355 = vpack.c.b16 %v271, %v270
    %v356 = vpack.c.b16 %v273, %v272
    %v357 = vpack.c.b16 %v275, %v274
    %v358 = vpack.c.b16 %v277, %v276
    %v359 = vpack.c.b16 %v279, %v278
    %v360 = vpack.c.b16 %v281, %v280
    %v361 = vpack.c.b16 %v283, %v282
    %v362 = vpack.c.b16 %v285, %v284
    %v363 = vpack.c.b16 %v287, %v286
    %v364 = vpack.c.b16 %v289, %v288
    %v365 = vpack.c.b16 %v291, %v290
    %v366 = vpack.c.b16 %v293, %v292
    %v367 = vpack.c.b16 %v295, %v294
    %v368 = vpack.c.b16 %v297, %v296
    %v369 = vpack.c.b16 %v299, %v298
    %v370 = vpack.c.b16 %v301, %v300
    %v371 = vpack.c.b16 %v303, %v302
    %v372 = vpack.c.b16 %v305, %v304
    %v373 = vpack.c.b16 %v307, %v306
    %v374 = vpack.c.b16 %v309, %v308
    %v375 = vpack.c.b16 %v311, %v310
    %v376 = vpack.c.b16 %v313, %v312
    %v377 = vpack.c.b16 %v315, %v314
    %v378 = vpack.c.b16 %v317, %v316
    %v379 = vpack.c.b16 %v319, %v318
    %v380 = vpack.c.b16 %v321, %v320
    %v381 = vpack.c.b16 %v323, %v322
    %v382 = vpack.c.b16 %v325, %v324
    %v383 = vpack.c.b16 %v327, %v326
    %v384 = vpack.c.b16 %v329, %v328
    %v385 = vpack.c.b16 %v331, %v330
    %v386 = vpack.c.b16 %v333, %v332
    %v387 = vpack.c.b16 %v335, %v334
    %v388 = vpack.c.b16 %v337, %v336
    %v389 = vpack.c.b16 %v339, %v338
    %v390 = vpack.c.b16 %v341, %v340
    %vm440 = vcmask 130048
    %v442 = vsel %vm440, %v47, 0
    %444 = vmatpush.bf16.msra.mxu0 %v349
    %445 = vmatpush.bf16.msra.mxu0 %v348
    %446 = vmatpush.bf16.msra.mxu0 %v347
    %447 = vmatpush.bf16.msra.mxu0 %v346
    %448 = vmatpush.bf16.msra.mxu0 %v345
    %449 = vmatpush.bf16.msra.mxu0 %v344
    %450 = vmatpush.bf16.msra.mxu0 %v343
    %451 = vmatpush.bf16.msra.mxu0 %v342
    %452 = vmatmul.bf16.gmra.mxu0 %v41
    %v453 = vpop.f32.mrf.mxu0
    %v454 = vadd.f32 0.0, %v453
    %v455 = vpop.f32.mrf.mxu0
    %456 = vdwg.mxu0
    %457 = vmatpush.bf16.msra.mxu0 %v357
    %458 = vmatpush.bf16.msra.mxu0 %v356
    %459 = vmatpush.bf16.msra.mxu0 %v355
    %460 = vmatpush.bf16.msra.mxu0 %v354
    %461 = vmatpush.bf16.msra.mxu0 %v353
    %462 = vmatpush.bf16.msra.mxu0 %v352
    %463 = vmatpush.bf16.msra.mxu0 %v351
    %464 = vmatpush.bf16.msra.mxu0 %v350
    %465 = vmatmul.bf16.gmra.mxu0 %v42
    %v466 = vpop.f32.mrf.mxu0
    %v467 = vadd.f32 %v454, %v466
    %v468 = vpop.f32.mrf.mxu0
    %469 = vdwg.mxu0
    %470 = vmatpush.bf16.msra.mxu0 %v365
    %471 = vmatpush.bf16.msra.mxu0 %v364
    %472 = vmatpush.bf16.msra.mxu0 %v363
    %473 = vmatpush.bf16.msra.mxu0 %v362
    %474 = vmatpush.bf16.msra.mxu0 %v361
    %475 = vmatpush.bf16.msra.mxu0 %v360
    %476 = vmatpush.bf16.msra.mxu0 %v359
    %477 = vmatpush.bf16.msra.mxu0 %v358
    %478 = vmatmul.bf16.gmra.mxu0 %v43
    %v479 = vpop.f32.mrf.mxu0
    %v480 = vadd.f32 %v467, %v479
    %v481 = vpop.f32.mrf.mxu0
    %482 = vdwg.mxu0
    %483 = vmatpush.bf16.msra.mxu0 %v373
    %484 = vmatpush.bf16.msra.mxu0 %v372
    %485 = vmatpush.bf16.msra.mxu0 %v371
    %486 = vmatpush.bf16.msra.mxu0 %v370
    %487 = vmatpush.bf16.msra.mxu0 %v369
    %488 = vmatpush.bf16.msra.mxu0 %v368
    %489 = vmatpush.bf16.msra.mxu0 %v367
    %490 = vmatpush.bf16.msra.mxu0 %v366
    %491 = vmatmul.bf16.gmra.mxu0 %v44
    %v492 = vpop.f32.mrf.mxu0
    %v493 = vadd.f32 %v480, %v492
    %v494 = vpop.f32.mrf.mxu0
    %495 = vdwg.mxu0
    %496 = vmatpush.bf16.msra.mxu0 %v381
    %497 = vmatpush.bf16.msra.mxu0 %v380
    %498 = vmatpush.bf16.msra.mxu0 %v379
    %499 = vmatpush.bf16.msra.mxu0 %v378
    %500 = vmatpush.bf16.msra.mxu0 %v377
    %501 = vmatpush.bf16.msra.mxu0 %v376
    %502 = vmatpush.bf16.msra.mxu0 %v375
    %503 = vmatpush.bf16.msra.mxu0 %v374
    %504 = vmatmul.bf16.gmra.mxu0 %v45
    %v505 = vpop.f32.mrf.mxu0
    %v506 = vadd.f32 %v493, %v505
    %v507 = vpop.f32.mrf.mxu0
    %508 = vdwg.mxu0
    %509 = vmatpush.bf16.msra.mxu0 %v389
    %510 = vmatpush.bf16.msra.mxu0 %v388
    %511 = vmatpush.bf16.msra.mxu0 %v387
    %512 = vmatpush.bf16.msra.mxu0 %v386
    %513 = vmatpush.bf16.msra.mxu0 %v385
    %514 = vmatpush.bf16.msra.mxu0 %v384
    %515 = vmatpush.bf16.msra.mxu0 %v383
    %516 = vmatpush.bf16.msra.mxu0 %v382
    %517 = vmatmul.bf16.gmra.mxu0 %v46
    %v518 = vpop.f32.mrf.mxu0
    %v519 = vadd.f32 %v506, %v518
    %v520 = vpop.f32.mrf.mxu0
    %521 = vdwg.mxu0
    %522 = vmatpush.bf16.msra.mxu0 0
    %523 = vmatpush.bf16.msra.mxu0 0
    %524 = vmatpush.bf16.msra.mxu0 0
    %525 = vmatpush.bf16.msra.mxu0 0
    %526 = vmatpush.bf16.msra.mxu0 0
    %527 = vmatpush.bf16.msra.mxu0 0
    %528 = vmatpush.bf16.msra.mxu0 0
    %529 = vmatpush.bf16.msra.mxu0 %v390
    %530 = vmatmul.bf16.gmra.mxu0 %v442
    %v531 = vpop.f32.mrf.mxu0
    %v532 = vadd.f32 %v519, %v531
    %v533 = vpop.f32.mrf.mxu0
    %534 = vdwg.mxu0
    %v535 = vmax.f32 %v532, 0.0
    %v536 = vpack.c.bf16 %v535, %v535
    %v537 = vld [vmem:[%s2] sm:$0xf]
    %v538 = vld [vmem:[%s2 + $0x4] sm:$0xf]
    %v539 = vld [vmem:[%s2 + $0x8] sm:$0xf]
    %v540 = vld [vmem:[%s2 + $0xc] sm:$0xf]
    %v541 = vld [vmem:[%s2 + $0x10] sm:$0xf]
    %v542 = vld [vmem:[%s2 + $0x14] sm:$0xf]
    %v543 = vld [vmem:[%s2 + $0x18] sm:$0xf]
    %v544 = vld [vmem:[%s2 + $0x1c] sm:$0xf]
    %v545 = vld [vmem:[%s2 + $0x20] sm:$0xf]
    %v546 = vld [vmem:[%s2 + $0x24] sm:$0xf]
    %v547 = vld [vmem:[%s2 + $0x28] sm:$0xf]
    %v548 = vld [vmem:[%s2 + $0x2c] sm:$0xf]
    %v549 = vld [vmem:[%s2 + $0x30] sm:$0xf]
    %v550 = vld [vmem:[%s2 + $0x34] sm:$0xf]
    %v551 = vld [vmem:[%s2 + $0x38] sm:$0xf]
    %v552 = vld [vmem:[%s2 + $0x3c] sm:$0xf]
    %v553 = vld [vmem:[%s3] sm:$0x1]
    %v555 = vperm.slane %v553, 0
    %v573 = vunpack.c.l.b16 %v537
    %v574 = vunpack.c.l.b16 %v538
    %v575 = vunpack.c.l.b16 %v539
    %v576 = vunpack.c.l.b16 %v540
    %v577 = vunpack.c.l.b16 %v541
    %v578 = vunpack.c.l.b16 %v542
    %v579 = vunpack.c.l.b16 %v543
    %v580 = vunpack.c.l.b16 %v544
    %v581 = vunpack.c.l.b16 %v545
    %v582 = vunpack.c.l.b16 %v546
    %v583 = vunpack.c.l.b16 %v547
    %v584 = vunpack.c.l.b16 %v548
    %v585 = vunpack.c.l.b16 %v549
    %v586 = vunpack.c.l.b16 %v550
    %v587 = vunpack.c.l.b16 %v551
    %v588 = vunpack.c.l.b16 %v552
    %v589 = vpack.c.b16 %v574, %v573
    %v590 = vpack.c.b16 %v576, %v575
    %v591 = vpack.c.b16 %v578, %v577
    %v592 = vpack.c.b16 %v580, %v579
    %v593 = vpack.c.b16 %v582, %v581
    %v594 = vpack.c.b16 %v584, %v583
    %v595 = vpack.c.b16 %v586, %v585
    %v596 = vpack.c.b16 %v588, %v587
    %605 = vmatpush.bf16.msra.mxu0 %v596
    %606 = vmatpush.bf16.msra.mxu0 %v595
    %607 = vmatpush.bf16.msra.mxu0 %v594
    %608 = vmatpush.bf16.msra.mxu0 %v593
    %609 = vmatpush.bf16.msra.mxu0 %v592
    %610 = vmatpush.bf16.msra.mxu0 %v591
    %611 = vmatpush.bf16.msra.mxu0 %v590
    %612 = vmatpush.bf16.msra.mxu0 %v589
    %613 = vmatmul.bf16.gmra.mxu0 %v536
    %v614 = vpop.f32.mrf.mxu0
    %v615 = vadd.f32 %v555, %v614
    %v616 = vpop.f32.mrf.mxu0
    %617 = vdwg.mxu0
    %618 = vmax.xlane.f32.xlu0 %v615
    %v619 = vpop.xlane.xlu0 %618
    %v620 = vsub.f32 %v615, %v619
    %v621 = vmul.f32 %v620, 1.442695
    %v622 = vpow.pop %v621
    %623 = vadd.xlane.f32.xlu0 %v622
    %v624 = vpop.xlane.xlu0 %623
    %v625 = vlog2.pop %v624
    %v626 = vmul.f32 %v625, 0.6931472
    %v627 = vsub.f32 %v620, %v626
    %628 = vst.msk [vmem:[%s4] sm:$0xff] %vm440, %v627
    // Predicated region
    $region22: #{net_forward.1} parent=1 // pred_check
      _
    $region23: #{net_forward.1} parent=1 // pred_check_branch
      %630 = sbr.rel (0) target = $region25
    $region24: #{net_forward.1} parent=1 // pred_region
      _
    $region25: #{net_forward.1} parent=1 // pred_fallthru
      _
    // Predicated region
    $region26: #{net_forward.1} parent=1 // pred_check
      _
    $region27: #{net_forward.1} parent=1 // pred_check_branch
      %632 = sbr.rel (0) target = $region29
    $region28: #{net_forward.1} parent=1 // pred_region
      _
    $region29: #{net_forward.1} parent=1 // pred_fallthru
      _
    %633 = vsyncpa [#allocation3], 1

</llo_original>
